<compile_context>
chip_gen: v6e
topology: v6e:2x2x1
jax: 0.10.0
libtpu: 0.0.40
codegen_flags: <defaults>
</compile_context>

<pallas_src>
import math

import jax
import jax.numpy as jnp
from jax.experimental import pallas as pl
from jax.experimental.pallas import tpu as pltpu


# ---------------------------------------------------------------------------
# Kernel 0: per-(batch, channel) sum and sum-of-squares, tiled over S.
# ---------------------------------------------------------------------------
def _gn_stats_kernel(x_ref, stats_ref):
    @pl.when(pl.program_id(1) == 0)
    def _():
        stats_ref[...] = jnp.zeros_like(stats_ref)

    x = x_ref[0]                                         # (C, ts) f32
    cs = jnp.sum(x, axis=1, keepdims=True)               # (C, 1)
    cs2 = jnp.sum(x * x, axis=1, keepdims=True)          # (C, 1)
    stats_ref[0] += jnp.concatenate([cs, cs2], axis=1)   # (C, 2)


# ---------------------------------------------------------------------------
# Kernel 1: GroupNorm normalize (per-batch scale/shift, affine folded in) +
#           QKV projection, tiled over S.  Emits q, k^T, v in bf16.
# ---------------------------------------------------------------------------
def _gn_qkv_kernel(x_ref, a_ref, d_ref, wqv_ref, bqv_ref, wkt_ref, bk_ref,
                   q_ref, kt_ref, v_ref):
    x = x_ref[0]                                          # (C, ts) f32
    C = x.shape[0]
    xn = (x * a_ref[0] + d_ref[0]).astype(jnp.bfloat16)   # GroupNorm'd, bf16

    # q / v: standard channel-major matmul; 1/sqrt(C) is folded into W_q/b_q.
    qv = jnp.dot(wqv_ref[...], xn,
                 preferred_element_type=jnp.float32) + bqv_ref[...]   # (2C, ts)
    q_ref[0] = qv[:C].astype(jnp.bfloat16)
    v_ref[0, 0] = qv[C:].astype(jnp.bfloat16)

    # k^T: contract the channel dim of xn with the channel dim of W_k^T so the
    # result comes out directly in (ts, C) layout; this hoists all transpose
    # work out of the attention inner loop (done once per S element).
    kt = jax.lax.dot_general(xn, wkt_ref[...], (((0,), (0,)), ((), ())),
                             preferred_element_type=jnp.float32) + bk_ref[...]
    kt_ref[0, 0] = kt.astype(jnp.bfloat16)                # (ts, C)


# ---------------------------------------------------------------------------
# Kernel 2: online-softmax attention + out-proj + residual (channel-major).
# ---------------------------------------------------------------------------
def _online_softmax_step(q, kt, v, m_sc, l_sc, acc_sc):
    # q: (C, tq) bf16, kt: (tkv, C) bf16, v: (C, tkv) bf16
    s = jnp.dot(kt, q, preferred_element_type=jnp.float32)       # (tkv, tq)
    m_prev = m_sc[...]                                           # (1, tq)
    m_new = jnp.maximum(m_prev, jnp.max(s, axis=0, keepdims=True))
    alpha = jnp.exp(m_prev - m_new)
    # TODO(synk): on v6e/v7x a bf16 exp (EUP) roughly halves this; kept f32 for
    # parity with the reference on all generations.
    p = jnp.exp(s - m_new)                                       # (tkv, tq)
    l_sc[...] = alpha * l_sc[...] + jnp.sum(p, axis=0, keepdims=True)
    acc_sc[...] = alpha * acc_sc[...] + jnp.dot(
        v, p.astype(jnp.bfloat16), preferred_element_type=jnp.float32)
    m_sc[...] = m_new


def _attn_finalize(xres_ref, wout_ref, bout_ref, o_ref, l_sc, acc_sc):
    # Exact reciprocal (off the matmul critical path) for better parity.
    attn = acc_sc[...] * pl.reciprocal(l_sc[...], approx=False)  # (C, tq)
    out = jnp.dot(wout_ref[...], attn.astype(jnp.bfloat16),
                  preferred_element_type=jnp.float32) + bout_ref[...]
    o_ref[0] = out + xres_ref[0]


def _attn_resident_kernel(q_ref, kt_ref, v_ref, xres_ref, wout_ref, bout_ref,
                          o_ref, m_sc, l_sc, acc_sc):
    # Whole K^T / V of this batch element is VMEM-resident; walk kv chunks.
    m_sc[...] = jnp.full_like(m_sc, -jnp.inf)
    l_sc[...] = jnp.zeros_like(l_sc)
    acc_sc[...] = jnp.zeros_like(acc_sc)

    n_kv = kt_ref.shape[1]

    @pl.loop(0, n_kv)
    def _(j):
        _online_softmax_step(q_ref[0], kt_ref[0, j], v_ref[0, j],
                             m_sc, l_sc, acc_sc)

    _attn_finalize(xres_ref, wout_ref, bout_ref, o_ref, l_sc, acc_sc)


def _attn_streaming_kernel(q_ref, kt_ref, v_ref, xres_ref, wout_ref, bout_ref,
                           o_ref, m_sc, l_sc, acc_sc):
    ki = pl.program_id(2)

    @pl.when(ki == 0)
    def _():
        m_sc[...] = jnp.full_like(m_sc, -jnp.inf)
        l_sc[...] = jnp.zeros_like(l_sc)
        acc_sc[...] = jnp.zeros_like(acc_sc)

    _online_softmax_step(q_ref[0], kt_ref[0, 0], v_ref[0, 0],
                         m_sc, l_sc, acc_sc)

    @pl.when(ki == pl.num_programs(2) - 1)
    def _():
        _attn_finalize(xres_ref, wout_ref, bout_ref, o_ref, l_sc, acc_sc)


# ---------------------------------------------------------------------------
# Wrapper helpers
# ---------------------------------------------------------------------------
def _pick_tile(s, target):
    """Largest multiple of 128 that divides s and is <= target, else s."""
    if s <= target:
        return s
    t = (target // 128) * 128
    while t >= 128:
        if s % t == 0:
            return t
        t -= 128
    # TODO(synk): pad S (with masked softmax) instead of whole-S blocks when
    # H*W has no multiple-of-128 divisor; this fallback is memory-heavy.
    return s


def _device_vmem_cap():
    try:
        cap = int(getattr(pltpu.get_tpu_info(), "vmem_capacity_bytes", 0))
        if cap > 0:
            return cap
    except Exception:
        pass
    return 64 << 20        # conservative fallback (v7x physical VMEM)


def _vmem_limit(est_bytes, cap):
    want = (int(est_bytes) * 3) // 2              # 1.5x headroom for pipelining
    return int(max(32 << 20, min((cap * 7) // 8, want)))


def _kv_stream_spec(shape, index_map):
    # 3-deep buffering on streamed K/V tiles; fall back to the default
    # double-buffering if this Pallas build lacks pipeline_mode.
    try:
        return pl.BlockSpec(shape, index_map, pipeline_mode=pl.Buffered(3))
    except TypeError:
        return pl.BlockSpec(shape, index_map)


# ---------------------------------------------------------------------------
# Wrapper
# ---------------------------------------------------------------------------
def vae_attention_block(x_nchw, gamma, beta, w_in, b_in, w_out, b_out,
                        *, num_groups=32, eps=1e-5,
                        q_tile_target=512, kv_tile_target=512):
    n, c, h, w = x_nchw.shape
    assert c % num_groups == 0, "channels must be divisible by num_groups"
    s = h * w
    cg = c // num_groups

    x = x_nchw.reshape(n, c, s).astype(jnp.float32)

    gamma = jnp.asarray(gamma, jnp.float32)
    beta = jnp.asarray(beta, jnp.float32)
    w_in = jnp.asarray(w_in, jnp.float32)        # (3C, C)
    b_in = jnp.asarray(b_in, jnp.float32)        # (3C,)
    w_out = jnp.asarray(w_out, jnp.float32)      # (C, C)
    b_out = jnp.asarray(b_out, jnp.float32)      # (C,)

    # Fold the 1/sqrt(C) attention scale into the q projection (free).
    scale = 1.0 / math.sqrt(c)
    w_q, w_k, w_v = w_in[:c] * scale, w_in[c:2 * c], w_in[2 * c:]
    b_q, b_k, b_v = b_in[:c] * scale, b_in[c:2 * c], b_in[2 * c:]

    w_qv = jnp.concatenate([w_q, w_v], axis=0).astype(jnp.bfloat16)   # (2C, C)
    b_qv = jnp.concatenate([b_q, b_v]).reshape(2 * c, 1)              # (2C, 1) f32
    w_kt = w_k.T.astype(jnp.bfloat16)                                 # (C, C)  (W_k^T)
    b_k_row = b_k.reshape(1, c)                                       # (1, C)  f32
    w_out_bf = w_out.astype(jnp.bfloat16)                             # (C, C)
    b_out2 = b_out.reshape(c, 1)                                      # (C, 1)  f32

    cap = _device_vmem_cap()

    # ---- kernel 0: per-channel sum / sumsq, tiled over S ----
    ts_st = _pick_tile(s, 2048)
    est0 = c * ts_st * 4 * 2 + c * 2 * 4 * 2 + (256 << 10)
    stats = pl.pallas_call(
        _gn_stats_kernel,
        out_shape=jax.ShapeDtypeStruct((n, c, 2), jnp.float32),
        grid=(n, s // ts_st),
        in_specs=[pl.BlockSpec((1, c, ts_st), lambda b, si: (b, 0, si))],
        out_specs=pl.BlockSpec((1, c, 2), lambda b, si: (b, 0, 0)),
        compiler_params=pltpu.CompilerParams(
            dimension_semantics=("parallel", "arbitrary"),
            vmem_limit_bytes=_vmem_limit(est0, cap)),
    )(x)

    # Finish the (tiny) group statistics and fold gamma/beta into a per-batch,
    # per-channel scale/shift:  xn = a * x + d.
    cnt = jnp.float32(cg * s)
    g_sum = stats[:, :, 0].reshape(n, num_groups, cg).sum(-1)     # (n, G)
    g_sq = stats[:, :, 1].reshape(n, num_groups, cg).sum(-1)
    mean = g_sum / cnt
    var = jnp.maximum(g_sq / cnt - mean * mean, 0.0)
    rstd = jax.lax.rsqrt(var + eps)
    a = (gamma.reshape(num_groups, cg)[None] * rstd[:, :, None]).reshape(n, c)
    d = beta[None, :] - jnp.repeat(mean, cg, axis=1) * a
    a3 = a.reshape(n, c, 1)
    d3 = d.reshape(n, c, 1)

    # ---- kernel 1: normalize + QKV projection, tiled over S ----
    tkv = _pick_tile(s, kv_tile_target)    # kernel-1 S tile == kernel-2 kv chunk
    n_kv = s // tkv
    est1 = (c * tkv * 4 * 2            # x tile (double buffered)
            + 3 * c * c * 2 * 2        # W_qv + W_k^T (double buffered)
            + 3 * c * tkv * 4          # f32 qv / kt temporaries
            + 3 * c * tkv * 2 * 2)     # bf16 q / k^T / v out tiles
    q_cm, k_t, v_cm = pl.pallas_call(
        _gn_qkv_kernel,
        out_shape=(jax.ShapeDtypeStruct((n, c, s), jnp.bfloat16),
                   jax.ShapeDtypeStruct((n, n_kv, tkv, c), jnp.bfloat16),
                   jax.ShapeDtypeStruct((n, n_kv, c, tkv), jnp.bfloat16)),
        grid=(n, n_kv),
        in_specs=[
            pl.BlockSpec((1, c, tkv), lambda b, si: (b, 0, si)),
            pl.BlockSpec((1, c, 1), lambda b, si: (b, 0, 0)),
            pl.BlockSpec((1, c, 1), lambda b, si: (b, 0, 0)),
            pl.BlockSpec((2 * c, c), lambda b, si: (0, 0)),
            pl.BlockSpec((2 * c, 1), lambda b, si: (0, 0)),
            pl.BlockSpec((c, c), lambda b, si: (0, 0)),
            pl.BlockSpec((1, c), lambda b, si: (0, 0)),
        ],
        out_specs=(
            pl.BlockSpec((1, c, tkv), lambda b, si: (b, 0, si)),
            pl.BlockSpec((1, 1, tkv, c), lambda b, si: (b, si, 0, 0)),
            pl.BlockSpec((1, 1, c, tkv), lambda b, si: (b, si, 0, 0)),
        ),
        compiler_params=pltpu.CompilerParams(
            dimension_semantics=("parallel", "parallel"),
            vmem_limit_bytes=_vmem_limit(est1, cap)),
    )(x, a3, d3, w_qv, b_qv, w_kt, b_k_row)

    # ---- kernel 2: attention + out-proj + residual ----
    tq = _pick_tile(s, q_tile_target)
    n_q = s // tq

    per_q = (c * tq * 2 * 2          # q tile
             + c * tq * 4 * 2        # residual tile
             + c * tq * 4 * 2        # output tile
             + c * tq * 4            # accumulator scratch
             + c * c * 2 * 2         # W_out
             + tkv * tq * 4 * 3)     # score / prob temporaries
    kv_resident = 2 * (c * s * 2) * 2        # full K^T + V, double buffered
    kv_stream = 2 * (c * tkv * 2) * 3        # K^T + V tiles, 3-deep
    use_resident = (per_q + kv_resident) <= (cap * 5) // 8

    scratch = [pltpu.VMEM((1, tq), jnp.float32),       # running max
               pltpu.VMEM((1, tq), jnp.float32),       # running denom
               pltpu.VMEM((c, tq), jnp.float32)]       # output accumulator

    out_shape = jax.ShapeDtypeStruct((n, c, s), jnp.float32)

    if use_resident:
        out = pl.pallas_call(
            _attn_resident_kernel,
            out_shape=out_shape,
            grid=(n, n_q),
            in_specs=[
                pl.BlockSpec((1, c, tq), lambda b, qi: (b, 0, qi)),
                pl.BlockSpec((1, n_kv, tkv, c), lambda b, qi: (b, 0, 0, 0)),
                pl.BlockSpec((1, n_kv, c, tkv), lambda b, qi: (b, 0, 0, 0)),
                pl.BlockSpec((1, c, tq), lambda b, qi: (b, 0, qi)),
                pl.BlockSpec((c, c), lambda b, qi: (0, 0)),
                pl.BlockSpec((c, 1), lambda b, qi: (0, 0)),
            ],
            out_specs=pl.BlockSpec((1, c, tq), lambda b, qi: (b, 0, qi)),
            scratch_shapes=scratch,
            compiler_params=pltpu.CompilerParams(
                dimension_semantics=("parallel", "parallel"),
                vmem_limit_bytes=_vmem_limit(per_q + kv_resident, cap)),
        )(q_cm, k_t, v_cm, x, w_out_bf, b_out2)
    else:
        out = pl.pallas_call(
            _attn_streaming_kernel,
            out_shape=out_shape,
            grid=(n, n_q, n_kv),
            in_specs=[
                pl.BlockSpec((1, c, tq), lambda b, qi, ki: (b, 0, qi)),
                _kv_stream_spec((1, 1, tkv, c), lambda b, qi, ki: (b, ki, 0, 0)),
                _kv_stream_spec((1, 1, c, tkv), lambda b, qi, ki: (b, ki, 0, 0)),
                pl.BlockSpec((1, c, tq), lambda b, qi, ki: (b, 0, qi)),
                pl.BlockSpec((c, c), lambda b, qi, ki: (0, 0)),
                pl.BlockSpec((c, 1), lambda b, qi, ki: (0, 0)),
            ],
            out_specs=pl.BlockSpec((1, c, tq), lambda b, qi, ki: (b, 0, qi)),
            scratch_shapes=scratch,
            compiler_params=pltpu.CompilerParams(
                dimension_semantics=("parallel", "parallel", "arbitrary"),
                vmem_limit_bytes=_vmem_limit(per_q + kv_stream, cap)),
        )(q_cm, k_t, v_cm, x, w_out_bf, b_out2)

    return out.reshape(n, c, h, w)


# ---------------------------------------------------------------------------
# Pure-JAX reference (matches the PyTorch module, f32 throughout)
# ---------------------------------------------------------------------------
def reference(x, gamma, beta, w_in, b_in, w_out, b_out, *, num_groups=32, eps=1e-5):
    n, c, h, w = x.shape
    G = num_groups
    xg = x.reshape(n, G, c // G, h, w)
    mean = xg.mean(axis=(2, 3, 4), keepdims=True)
    var = ((xg - mean) ** 2).mean(axis=(2, 3, 4), keepdims=True)
    xn = (xg - mean) / jnp.sqrt(var + eps)
    xn = xn.reshape(n, c, h, w) * gamma[None, :, None, None] + beta[None, :, None, None]
    xs = xn.reshape(n, c, h * w).transpose(0, 2, 1)            # (n, s, c)
    qkv = xs @ w_in.T + b_in
    q, k, v = jnp.split(qkv, 3, axis=-1)
    attn = (q @ jnp.swapaxes(k, -1, -2)) / jnp.sqrt(jnp.float32(c))
    attn = jax.nn.softmax(attn, axis=-1)
    out = attn @ v
    out = out @ w_out.T + b_out
    out = out.transpose(0, 2, 1).reshape(n, c, h, w)
    return out + x


if __name__ == "__main__":
    # Small shapes consistent with the module (channels divisible by num_groups,
    # spatial size a multiple of 128 so all tiles are lane-dense).
    N, C, H, W = 2, 64, 16, 16
    NUM_GROUPS = 32

    key = jax.random.PRNGKey(0)
    kx, kg, kb, kwi, kbi, kwo, kbo = jax.random.split(key, 7)

    x = jax.random.normal(kx, (N, C, H, W), dtype=jnp.float32)
    gamma = 1.0 + 0.1 * jax.random.normal(kg, (C,), dtype=jnp.float32)
    beta = 0.1 * jax.random.normal(kb, (C,), dtype=jnp.float32)
    w_in = 0.05 * jax.random.normal(kwi, (3 * C, C), dtype=jnp.float32)
    b_in = 0.05 * jax.random.normal(kbi, (3 * C,), dtype=jnp.float32)
    w_out = 0.05 * jax.random.normal(kwo, (C, C), dtype=jnp.float32)
    b_out = 0.05 * jax.random.normal(kbo, (C,), dtype=jnp.float32)

    y = vae_attention_block(x, gamma, beta, w_in, b_in, w_out, b_out,
                            num_groups=NUM_GROUPS)
    jax.block_until_ready(y)

    y_ref = reference(x, gamma, beta, w_in, b_in, w_out, b_out,
                      num_groups=NUM_GROUPS)
    assert y.shape == (N, C, H, W)
    # bf16 MXU operands -> relaxed tolerance vs the f32 reference.
    err = float(jnp.max(jnp.abs(y - y_ref)))
    assert jnp.allclose(y, y_ref, atol=5e-2, rtol=5e-2), f"max abs err={err}"
    print("KERNEL_OK")
</pallas_src>

<mosaic_0001>
module attributes {stable_mosaic.version = 11 : i64} {
  func.func @_gn_stats_kernel(%arg0: i32, %arg1: i32, %arg2: memref<1x64x256xf32, #tpu.memory_space<vmem>>, %arg3: memref<1x64x2xf32, #tpu.memory_space<vmem>>) attributes {dimension_semantics = [#tpu.dimension_semantics<parallel>, #tpu.dimension_semantics<arbitrary>], iteration_bounds = array<i64: 2, 1>, scalar_prefetch = 0 : i64, scratch_operands = 0 : i64, tpu.core_type = #tpu.core_type<tc>, window_params = [{transform_indices = @transform_0, window_bounds = array<i64: 1, 64, 256>}, {transform_indices = @transform_1, window_bounds = array<i64: 1, 64, 2>}]} {
    %c0_i32 = arith.constant 0 : i32
    %0 = arith.cmpi eq, %arg1, %c0_i32 : i32
    %1 = arith.extui %0 : i1 to i32
    %c0_i32_0 = arith.constant 0 : i32
    %2 = arith.cmpi ne, %1, %c0_i32_0 : i32
    scf.if %2 {
      %cst_10 = arith.constant 0.000000e+00 : f32
      %17 = vector.broadcast %cst_10 : f32 to vector<1x64x2xf32>
      %c0_11 = arith.constant 0 : index
      %c0_12 = arith.constant 0 : index
      %c0_13 = arith.constant 0 : index
      %18 = vector.load %arg3[%c0_11, %c0_12, %c0_13] : memref<1x64x2xf32, #tpu.memory_space<vmem>>, vector<1x64x2xf32>
      tpu.vector_store %arg3[%c0_11, %c0_12, %c0_13], %17 {strides = array<i32>} : memref<1x64x2xf32, #tpu.memory_space<vmem>>, vector<1x64x2xf32>,
    } else {
    }
    %c0 = arith.constant 0 : index
    %c0_1 = arith.constant 0 : index
    %c0_2 = arith.constant 0 : index
    %3 = vector.load %arg2[%c0, %c0_1, %c0_2] : memref<1x64x256xf32, #tpu.memory_space<vmem>>, vector<1x64x256xf32>
    %4 = vector.shape_cast %3 : vector<1x64x256xf32> to vector<64x256xf32>
    %cst = arith.constant dense<0.000000e+00> : vector<64xf32>
    %5 = vector.multi_reduction <add>, %4, %cst [1] : vector<64x256xf32> to vector<64xf32>
    %6 = vector.shape_cast %5 : vector<64xf32> to vector<64x1xf32>
    %7 = arith.mulf %4, %4 : vector<64x256xf32>
    %cst_3 = arith.constant dense<0.000000e+00> : vector<64xf32>
    %8 = vector.multi_reduction <add>, %7, %cst_3 [1] : vector<64x256xf32> to vector<64xf32>
    %9 = vector.shape_cast %8 : vector<64xf32> to vector<64x1xf32>
    %c0_4 = arith.constant 0 : index
    %c0_5 = arith.constant 0 : index
    %c0_6 = arith.constant 0 : index
    %10 = vector.load %arg3[%c0_4, %c0_5, %c0_6] : memref<1x64x2xf32, #tpu.memory_space<vmem>>, vector<1x64x2xf32>
    %11 = vector.shape_cast %10 : vector<1x64x2xf32> to vector<64x2xf32>
    %12 = tpu.concatenate %6, %9 in 1 : vector<64x1xf32>, vector<64x1xf32> -> vector<64x2xf32>
    %13 = arith.addf %11, %12 : vector<64x2xf32>
    %c0_7 = arith.constant 0 : index
    %c0_8 = arith.constant 0 : index
    %c0_9 = arith.constant 0 : index
    %14 = vector.load %arg3[%c0_7, %c0_8, %c0_9] : memref<1x64x2xf32, #tpu.memory_space<vmem>>, vector<1x64x2xf32>
    %15 = vector.shape_cast %14 : vector<1x64x2xf32> to vector<64x2xf32>
    %16 = vector.shape_cast %13 : vector<64x2xf32> to vector<1x64x2xf32>
    tpu.vector_store %arg3[%c0_7, %c0_8, %c0_9], %16 {strides = array<i32>} : memref<1x64x2xf32, #tpu.memory_space<vmem>>, vector<1x64x2xf32>,
    return
  }
  func.func @transform_0(%arg0: i32, %arg1: i32) -> (i32, i32, i32) {
    %c0_i32 = arith.constant 0 : i32
    %c0_i32_0 = arith.constant 0 : i32
    return %arg0, %c0_i32, %arg1 : i32, i32, i32
  }
  func.func @transform_1(%arg0: i32, %arg1: i32) -> (i32, i32, i32) {
    %c0_i32 = arith.constant 0 : i32
    %c0_i32_0 = arith.constant 0 : i32
    %c0_i32_1 = arith.constant 0 : i32
    return %arg0, %c0_i32, %c0_i32_0 : i32, i32, i32
  }
}

</mosaic_0001>

<llo_original>
// kernel: tpu_custom_call.1
$region0: #{tpu_custom_call.1}
  #allocation0 [shape = 'u32[]', space=smem, size = 0x4, offset = 0x4, fixed_abs, tag = 'smem constant byte address 0x4 - core index']
  #allocation1 [shape = 'u32[144,128]{1,0:T(1,128)}', space=vmem, size = 0x12000, scoped, tag = 'internal scratch']
  %s0 = inlined_call_operand.hbm [shape: f32[2,64,256], index: 0, kind: input, shape index: {}]
  %s1 = inlined_call_operand.vmem [shape: f32[2,64,2], index: 1, kind: output, shape index: {}]
  %s2 = sld [smem:[#allocation0]]
  $region45: #{tpu_custom_call.1} parent=0
    _
  %s4 = ssub.s32 1, %s2
  %s5 = scalar_select 0, %s4, %s2
  $region1: #{tpu_custom_call.1} parent=0
    #allocation2 [shape = 'u8[131072]{0}', space=vmem, size = 0x20000, scoped, tag = 'input window, operand 0']
    #allocation3 [shape = 's32[2]{0}', space=sflag, size = 0x8, scoped, tag = 'scoped memory for tpu_custom_call.1']
    %6 = vsyncpa [#allocation3], 0
    %s7 = scalar_lea.sflag [#allocation3], 1
    %8 = vsyncpa %s7, 0
    loop: start=0, step=1, limit=4
    $region2: #{tpu_custom_call.1} parent=1 // loop_pre_header
      _
    $region3: #{tpu_custom_call.1} parent=1 // loop_header
      %s10 = sphi 0, %s14
      %p11 = scmp.ge.s32.totalorder %s10, 4
      %s17 = sphi 0, %s29
      %s18 = sphi 0, %s25
      %s19 = sphi 0, %s17
      %s20 = sphi 0, %s18
      %s21 = sphi 0, %s19
      %s22 = sphi 0, %s20
      %s34 = sphi 0, %s36
      %s37 = sphi 0, %s34
      %s38 = sphi 0, %s37
      %s54 = sphi 0, %s38
      %s60 = sphi 0, %s62
      %s63 = sphi 0, %s60
      %s64 = sphi 0, %s63
      %s80 = sphi 0, %s64
    $region4: #{tpu_custom_call.1} parent=1 // loop_header_branch
      %13 = sbr.rel (%p11) target = $region8
    $region5: #{tpu_custom_call.1} parent=1 // loop_body
      %s15 = ssub.s32 %s10, 1
      %s16 = ssub.s32 %s10, 2
      %s23 = sadd.s32 1, %s18
      %p24 = scmp.ge.s32.totalorder %s23, 1
      %s25 = scalar_select %p24, 0, %s23
      %s26 = sadd.s32 1, %s17
      %s27 = scalar_select %p24, %s26, %s17
      %p28 = scmp.ge.s32.totalorder %s27, 2
      %s29 = scalar_select %p28, 0, %s27
      %s30 = ssub.s32 %s17, %s29
      %s31 = ssub.s32 %s18, %s25
      %s32 = sor.u32 %s30, %s31
      %p33 = scmp.eq.s32.totalorder %s32, 0
      %s35 = sadd.s32 %s34, 1
      %s36 = scalar_select %p33, %s34, %s35
      %p39 = pneg %p33
      %p40 = scmp.eq.s32.totalorder %s10, 1
      %p41 = por %p39, %p40
      %p42 = scmp.ne.s32.totalorder %s34, %s37
      %p43 = scmp.eq.s32.totalorder %s10, 0
      %p44 = por %p42, %p43
      %p45 = scmp.ne.s32.totalorder %s34, %s37
      %p46 = scmp.eq.s32.totalorder %s15, 1
      %p47 = por %p45, %p46
      %p48 = scmp.ne.s32.totalorder %s37, %s38
      %p49 = scmp.eq.s32.totalorder %s15, 0
      %p50 = por %p48, %p49
      %p51 = scmp.ne.s32.totalorder %s37, %s38
      %p52 = scmp.eq.s32.totalorder %s16, 1
      %p53 = por %p51, %p52
      %p55 = scmp.ne.s32.totalorder %s38, %s54
      %p56 = scmp.eq.s32.totalorder %s16, 0
      %p57 = por %p55, %p56
      %s58 = ssub.s32 %s17, %s29
      %p59 = scmp.eq.s32.totalorder %s58, 0
      %s61 = sadd.s32 %s60, 1
      %s62 = scalar_select %p59, %s60, %s61
      %p65 = pneg %p59
      %p66 = scmp.eq.s32.totalorder %s10, 1
      %p67 = por %p65, %p66
      %p68 = scmp.ne.s32.totalorder %s60, %s63
      %p69 = scmp.eq.s32.totalorder %s10, 0
      %p70 = por %p68, %p69
      %p71 = scmp.ne.s32.totalorder %s60, %s63
      %p72 = scmp.eq.s32.totalorder %s15, 1
      %p73 = por %p71, %p72
      %p74 = scmp.ne.s32.totalorder %s63, %s64
      %p75 = scmp.eq.s32.totalorder %s15, 0
      %p76 = por %p74, %p75
      %p77 = scmp.ne.s32.totalorder %s63, %s64
      %p78 = scmp.eq.s32.totalorder %s16, 1
      %p79 = por %p77, %p78
      %p81 = scmp.ne.s32.totalorder %s64, %s80
      %p82 = scmp.eq.s32.totalorder %s16, 0
      %p83 = por %p81, %p82
      %p84 = scmp.le.s32.totalorder 1, %s10
      %p85 = scmp.lt.s32.totalorder %s10, 3
      %p86 = pnand %p84, %p85
      %p87 = pneg %p86
      // Predicated region
      $region9: #{tpu_custom_call.1} parent=5 // pred_check
        _
      $region10: #{tpu_custom_call.1} parent=5 // pred_check_branch
        %89 = sbr.rel (%p86) target = $region12
      $region11: #{tpu_custom_call.1} parent=5 // pred_region
        %s90 = ssub.s32 %s10, 1
      $region12: #{tpu_custom_call.1} parent=5 // pred_fallthru
        _
      %p91 = scmp.lt.s32.totalorder %s10, 2
      // Predicated region
      $region13: #{tpu_custom_call.1} parent=5 // pred_check
        %p92 = pneg %p91
      $region14: #{tpu_custom_call.1} parent=5 // pred_check_branch
        %94 = sbr.rel (%p92) target = $region16
      $region15: #{tpu_custom_call.1} parent=5 // pred_region
        // Predicated region
        $region17: #{tpu_custom_call.1} parent=15 // pred_check
          %p95 = pneg %p44
        $region18: #{tpu_custom_call.1} parent=15 // pred_check_branch
          %97 = sbr.rel (%p95) target = $region20
        $region19: #{tpu_custom_call.1} parent=15 // pred_region
          %s98 = sand.u32 %s34, 1
          %s99 = scalar_lea.sflag [#allocation3], %s98
          %s100 = sand.u32 %s34, 1
          %s101 = smul.addr %s100, 128
          %s102 = scalar_lea.vmem [#allocation2], %s101
          %s103 = smul.u32 2, %s18
          %s105 = ssub.s32 2048, 2048
          %106 = vsyncadd %s99, %s105
          %s107 = smul.addr %s17, 16
          %s108 = sadd.s32 %s103, %s107
          %s109 = smul.addr %s108, 128
          %s110 = scalar_lea.hbm %s0, %s109
          %s111 = sshll.u32 %s102, 4
          %s112 = int_to_ptr.vmem [resolvable:$true] %s111
          %117 = dma.hbm_to_vmem [thread:$0]  %s110, 2048, %s112, %s99, 256, 256, 16
        $region20: #{tpu_custom_call.1} parent=15 // pred_fallthru
          _
      $region16: #{tpu_custom_call.1} parent=5 // pred_fallthru
        _
      %p118 = scmp.le.s32.totalorder 1, %s10
      %p119 = scmp.lt.s32.totalorder %s10, 3
      %p120 = pnand %p118, %p119
      %p121 = pneg %p120
      // Predicated region
      $region21: #{tpu_custom_call.1} parent=5 // pred_check
        _
      $region22: #{tpu_custom_call.1} parent=5 // pred_check_branch
        %123 = sbr.rel (%p120) target = $region24
      $region23: #{tpu_custom_call.1} parent=5 // pred_region
        %s124 = ssub.s32 %s10, 1
        %s125 = sand.u32 %s37, 1
        %s126 = scalar_lea.sflag [#allocation3], %s125
        %s127 = sand.u32 %s37, 1
        %s128 = smul.addr %s127, 128
        %s129 = scalar_lea.vmem [#allocation2], %s128
        // Predicated region
        $region25: #{tpu_custom_call.1} parent=23 // pred_check
          %p130 = pneg %p50
        $region26: #{tpu_custom_call.1} parent=23 // pred_check_branch
          %132 = sbr.rel (%p130) target = $region28
        $region27: #{tpu_custom_call.1} parent=23 // pred_region
          %133 = dma.done %s126, 2048
        $region28: #{tpu_custom_call.1} parent=23 // pred_fallthru
          _
        %s134 = sand.u32 %s37, 1
        %s135 = scalar_lea.sflag [#allocation3], %s134
        %s136 = sand.u32 %s37, 1
        %s137 = smul.addr %s136, 128
        %s138 = scalar_lea.vmem [#allocation2], %s137
        %p139 = pneg %p50
        %p140 = pneg %p47
        %p141 = pneg %p76
        %p142 = pneg %p73
        %p143 = scmp.lt.s32.totalorder %s19, 1
        %s144 = scalar_select %p143, %s19, 1
        %s145 = smul.addr %s144, 8
        %s146 = smul.addr %s145, 8
        %s147 = scalar_lea.vmem %s1, %s146
        %s148 = smul.u32 2, %s20
        %p149 = scmp.lt.s32.totalorder %s19, 1
        %s150 = scalar_select %p149, %s19, 1
        %s151 = smul.addr %s150, 8
        %s152 = smul.addr %s151, 8
        %s153 = scalar_lea.vmem %s1, %s152
        %p154 = scmp.eq.s32.totalorder %s20, 0
        // Predicated region
        $region29: #{tpu_custom_call.1} parent=23 // pred_check
          %p155 = pneg %p154
        $region30: #{tpu_custom_call.1} parent=23 // pred_check_branch
          %157 = sbr.rel (%p155) target = $region32
        $region31: #{tpu_custom_call.1} parent=23 // pred_region
          %vm158 = vcmask 15360
          %159 = vst.msk [vmem:[%s153] sm:$0xff] %vm158, 0.0
          %160 = vst.msk [vmem:[%s153 + $0x8] sm:$0xff] %vm158, 0.0
          %161 = vst.msk [vmem:[%s153 + $0x10] sm:$0xff] %vm158, 0.0
          %162 = vst.msk [vmem:[%s153 + $0x18] sm:$0xff] %vm158, 0.0
          %163 = vst.msk [vmem:[%s153 + $0x20] sm:$0xff] %vm158, 0.0
          %164 = vst.msk [vmem:[%s153 + $0x28] sm:$0xff] %vm158, 0.0
          %165 = vst.msk [vmem:[%s153 + $0x30] sm:$0xff] %vm158, 0.0
          %166 = vst.msk [vmem:[%s153 + $0x38] sm:$0xff] %vm158, 0.0
        $region32: #{tpu_custom_call.1} parent=23 // pred_fallthru
          _
        %v167 = vld [vmem:[%s129] sm:$0xff]
        %v168 = vld [vmem:[%s129 + $0x8] sm:$0xff]
        %v169 = vld [vmem:[%s129 + $0x10] sm:$0xff]
        %v170 = vld [vmem:[%s129 + $0x18] sm:$0xff]
        %v171 = vld [vmem:[%s129 + $0x20] sm:$0xff]
        %v172 = vld [vmem:[%s129 + $0x28] sm:$0xff]
        %v173 = vld [vmem:[%s129 + $0x30] sm:$0xff]
        %v174 = vld [vmem:[%s129 + $0x38] sm:$0xff]
        %v175 = vld [vmem:[%s129 + $0x40] sm:$0xff]
        %v176 = vld [vmem:[%s129 + $0x48] sm:$0xff]
        %v177 = vld [vmem:[%s129 + $0x50] sm:$0xff]
        %v178 = vld [vmem:[%s129 + $0x58] sm:$0xff]
        %v179 = vld [vmem:[%s129 + $0x60] sm:$0xff]
        %v180 = vld [vmem:[%s129 + $0x68] sm:$0xff]
        %v181 = vld [vmem:[%s129 + $0x70] sm:$0xff]
        %v182 = vld [vmem:[%s129 + $0x78] sm:$0xff]
        %v183 = vadd.f32 %v167, %v168
        %184 = vadd.xlane.f32.xlu0 %v183
        %v185 = vpop.xlane.xlu0 %184
        %v186 = vadd.f32 %v169, %v170
        %187 = vadd.xlane.f32.xlu0 %v186
        %v188 = vpop.xlane.xlu0 %187
        %v189 = vadd.f32 %v171, %v172
        %190 = vadd.xlane.f32.xlu0 %v189
        %v191 = vpop.xlane.xlu0 %190
        %v192 = vadd.f32 %v173, %v174
        %193 = vadd.xlane.f32.xlu0 %v192
        %v194 = vpop.xlane.xlu0 %193
        %v195 = vadd.f32 %v175, %v176
        %196 = vadd.xlane.f32.xlu0 %v195
        %v197 = vpop.xlane.xlu0 %196
        %v198 = vadd.f32 %v177, %v178
        %199 = vadd.xlane.f32.xlu0 %v198
        %v200 = vpop.xlane.xlu0 %199
        %v201 = vadd.f32 %v179, %v180
        %202 = vadd.xlane.f32.xlu0 %v201
        %v203 = vpop.xlane.xlu0 %202
        %v204 = vadd.f32 %v181, %v182
        %205 = vadd.xlane.f32.xlu0 %v204
        %v206 = vpop.xlane.xlu0 %205
        %v207 = vmul.f32 %v167, %v167
        %v208 = vmul.f32 %v168, %v168
        %v209 = vmul.f32 %v169, %v169
        %v210 = vmul.f32 %v170, %v170
        %v211 = vmul.f32 %v171, %v171
        %v212 = vmul.f32 %v172, %v172
        %v213 = vmul.f32 %v173, %v173
        %v214 = vmul.f32 %v174, %v174
        %v215 = vmul.f32 %v175, %v175
        %v216 = vmul.f32 %v176, %v176
        %v217 = vmul.f32 %v177, %v177
        %v218 = vmul.f32 %v178, %v178
        %v219 = vmul.f32 %v179, %v179
        %v220 = vmul.f32 %v180, %v180
        %v221 = vmul.f32 %v181, %v181
        %v222 = vmul.f32 %v182, %v182
        %v223 = vadd.f32 %v207, %v208
        %224 = vadd.xlane.f32.xlu0 %v223
        %v225 = vpop.xlane.xlu0 %224
        %v226 = vadd.f32 %v209, %v210
        %227 = vadd.xlane.f32.xlu0 %v226
        %v228 = vpop.xlane.xlu0 %227
        %v229 = vadd.f32 %v211, %v212
        %230 = vadd.xlane.f32.xlu0 %v229
        %v231 = vpop.xlane.xlu0 %230
        %v232 = vadd.f32 %v213, %v214
        %233 = vadd.xlane.f32.xlu0 %v232
        %v234 = vpop.xlane.xlu0 %233
        %v235 = vadd.f32 %v215, %v216
        %236 = vadd.xlane.f32.xlu0 %v235
        %v237 = vpop.xlane.xlu0 %236
        %v238 = vadd.f32 %v217, %v218
        %239 = vadd.xlane.f32.xlu0 %v238
        %v240 = vpop.xlane.xlu0 %239
        %v241 = vadd.f32 %v219, %v220
        %242 = vadd.xlane.f32.xlu0 %v241
        %v243 = vpop.xlane.xlu0 %242
        %v244 = vadd.f32 %v221, %v222
        %245 = vadd.xlane.f32.xlu0 %v244
        %v246 = vpop.xlane.xlu0 %245
        %v247 = vld [vmem:[%s153] sm:$0xff]
        %v248 = vld [vmem:[%s153 + $0x8] sm:$0xff]
        %v249 = vld [vmem:[%s153 + $0x10] sm:$0xff]
        %v250 = vld [vmem:[%s153 + $0x18] sm:$0xff]
        %v251 = vld [vmem:[%s153 + $0x20] sm:$0xff]
        %v252 = vld [vmem:[%s153 + $0x28] sm:$0xff]
        %v253 = vld [vmem:[%s153 + $0x30] sm:$0xff]
        %v254 = vld [vmem:[%s153 + $0x38] sm:$0xff]
        %vm255 = vcmask 7168
        %v256 = vsel %vm255, %v185, %v225
        %v257 = vsel %vm255, %v188, %v228
        %v258 = vsel %vm255, %v191, %v231
        %v259 = vsel %vm255, %v194, %v234
        %v260 = vsel %vm255, %v197, %v237
        %v261 = vsel %vm255, %v200, %v240
        %v262 = vsel %vm255, %v203, %v243
        %v263 = vsel %vm255, %v206, %v246
        %v264 = vadd.f32 %v247, %v256
        %v265 = vadd.f32 %v248, %v257
        %v266 = vadd.f32 %v249, %v258
        %v267 = vadd.f32 %v250, %v259
        %v268 = vadd.f32 %v251, %v260
        %v269 = vadd.f32 %v252, %v261
        %v270 = vadd.f32 %v253, %v262
        %v271 = vadd.f32 %v254, %v263
        %vm272 = vcmask 15360
        %273 = vst.msk [vmem:[%s153] sm:$0xff] %vm272, %v264
        %274 = vst.msk [vmem:[%s153 + $0x8] sm:$0xff] %vm272, %v265
        %275 = vst.msk [vmem:[%s153 + $0x10] sm:$0xff] %vm272, %v266
        %276 = vst.msk [vmem:[%s153 + $0x18] sm:$0xff] %vm272, %v267
        %277 = vst.msk [vmem:[%s153 + $0x20] sm:$0xff] %vm272, %v268
        %278 = vst.msk [vmem:[%s153 + $0x28] sm:$0xff] %vm272, %v269
        %279 = vst.msk [vmem:[%s153 + $0x30] sm:$0xff] %vm272, %v270
        %280 = vst.msk [vmem:[%s153 + $0x38] sm:$0xff] %vm272, %v271
        %p281 = scmp.lt.s32.totalorder %s19, 1
        %s282 = scalar_select %p281, %s19, 1
        %s283 = smul.addr %s282, 8
        %s284 = smul.addr %s283, 8
        %s285 = scalar_lea.vmem %s1, %s284
        // Predicated region
        $region33: #{tpu_custom_call.1} parent=23 // pred_check
          %p286 = pneg %p73
        $region34: #{tpu_custom_call.1} parent=23 // pred_check_branch
          %288 = sbr.rel (%p286) target = $region36
        $region35: #{tpu_custom_call.1} parent=23 // pred_region
          _
        $region36: #{tpu_custom_call.1} parent=23 // pred_fallthru
          _
      $region24: #{tpu_custom_call.1} parent=5 // pred_fallthru
        _
      %p289 = scmp.le.s32.totalorder 2, %s10
      // Predicated region
      $region37: #{tpu_custom_call.1} parent=5 // pred_check
        %p290 = pneg %p289
      $region38: #{tpu_custom_call.1} parent=5 // pred_check_branch
        %292 = sbr.rel (%p290) target = $region40
      $region39: #{tpu_custom_call.1} parent=5 // pred_region
        %s293 = ssub.s32 %s10, 2
        // Predicated region
        $region41: #{tpu_custom_call.1} parent=39 // pred_check
          %p294 = pneg %p79
        $region42: #{tpu_custom_call.1} parent=39 // pred_check_branch
          %296 = sbr.rel (%p294) target = $region44
        $region43: #{tpu_custom_call.1} parent=39 // pred_region
          %p297 = scmp.lt.s32.totalorder %s21, 1
          %s298 = scalar_select %p297, %s21, 1
          %s299 = smul.addr %s298, 8
          %s300 = smul.addr %s299, 8
          %s301 = scalar_lea.vmem %s1, %s300
        $region44: #{tpu_custom_call.1} parent=39 // pred_fallthru
          _
      $region40: #{tpu_custom_call.1} parent=5 // pred_fallthru
        _
    $region6: #{tpu_custom_call.1} parent=1 // loop_footer
      %s14 = sadd.s32 1, %s10
    $region7: #{tpu_custom_call.1} parent=1 // loop_footer_branch
      %9 = sbr.rel target = $region3
    $region8: #{tpu_custom_call.1} parent=1 // loop_exit
      _
    %302 = vsyncpa [#allocation3], 1
    %s303 = scalar_lea.sflag [#allocation3], 1
    %304 = vsyncpa %s303, 1

</llo_original>
